<compile_context>
chip_gen: v7x
topology: tpu7x:2x2x1
jax: 0.10.0
libtpu: 0.0.40
codegen_flags: <defaults>
</compile_context>

<pallas_src>
import jax
import jax.numpy as jnp
from jax import lax
from jax.experimental import pallas as pl
from jax.experimental.pallas import tpu as pltpu

# Contract the last axis of the activations against the last axis of a
# torch-layout [out, in] weight:  (B, K) x (N, K) -> (B, N)  ==  x @ W.T
_CONTRACT_LAST = (((1,), (1,)), ((), ()))


def _logreg_kernel(x_ref, ws_ref, w4_ref, o_ref):
    """Five chained bias-free linear layers (torch-layout weights) + sigmoid.

    x_ref  : [B, D]      activations
    ws_ref : [4, D, D]   the four square layers, stacked (single DMA)
    w4_ref : [O, D]      final projection, torch [out, in] layout
    o_ref  : [B, O]      sigmoid output

    Everything fits in VMEM as single tiles; the hot path is 5 MXU matmuls
    (f32 accumulation, weights contracted along their trailing axis so no
    wrapper transpose is needed) plus EUP exp/reciprocal for the sigmoid.
    NOTE: the matmul chain is serially dependent, so the 5 MXU ops cannot
    pipeline against each other -- irrelevant at this size; fold the weight
    chain offline if this ever becomes an inference-only path.
    """
    h = x_ref[...].astype(jnp.float32)
    for i in range(4):  # static (unrolled) indexing into the stacked weights
        h = lax.dot_general(h, ws_ref[i], dimension_numbers=_CONTRACT_LAST,
                            preferred_element_type=jnp.float32)
    h = lax.dot_general(h, w4_ref[...], dimension_numbers=_CONTRACT_LAST,
                        preferred_element_type=jnp.float32)
    # sigmoid(z) = 1 / (1 + exp(-z)): exp -> EUP, reciprocal -> EUP slot.
    # approx=False keeps the 1e-5 accuracy requirement.
    # Output last dim (O=4) << 128 lanes => a single masked vst at this size;
    # acceptable. Do NOT tile the output below 128 lanes if O ever grows.
    o_ref[...] = pl.reciprocal(1.0 + jnp.exp(-h), approx=False).astype(o_ref.dtype)


@jax.jit
def logistic_regression_forward(x, w, w1, w2, w3, w4):
    """x: [B, D]; w..w3: torch-layout [D, D]; w4: torch-layout [O, D].

    Replicates: sigmoid(linear4(linear3(linear2(linear1(linear(x))))))
    with every Linear bias-free (matches the PyTorch module).
    """
    B, D = x.shape
    O = w4.shape[0]

    # One stacked [4, D, D] operand -> one DMA for the four square weights
    # (instead of four separate tiny transfers).
    ws = jnp.stack([w, w1, w2, w3], axis=0)

    # grid=() / single invocation: declare whole-array VMEM residency, no
    # block_shape / index_map needed.
    vmem = pl.BlockSpec(memory_space=pltpu.MemorySpace.VMEM)

    return pl.pallas_call(
        _logreg_kernel,
        out_shape=jax.ShapeDtypeStruct((B, O), jnp.float32),
        in_specs=[vmem, vmem, vmem],
        out_specs=vmem,
    )(x, ws, w4)


def _reference(x, w, w1, w2, w3, w4):
    h = x @ w.T
    h = h @ w1.T
    h = h @ w2.T
    h = h @ w3.T
    h = h @ w4.T
    return jax.nn.sigmoid(h)


if __name__ == "__main__":
    key = jax.random.PRNGKey(0)
    batch = 8
    input_dim = 32
    output_dim = 4  # hidden_dim is unused by the module's forward

    k_x, k0, k1, k2, k3, k4 = jax.random.split(key, 6)

    # Deterministic "Kaiming-uniform-like" init: U(-1/sqrt(fan_in), 1/sqrt(fan_in)),
    # matching torch.nn.Linear's default bound. Weight layout matches torch: [out, in].
    bound = 1.0 / (input_dim ** 0.5)
    x = jax.random.normal(k_x, (batch, input_dim), dtype=jnp.float32)
    w = jax.random.uniform(k0, (input_dim, input_dim), jnp.float32, -bound, bound)
    w1 = jax.random.uniform(k1, (input_dim, input_dim), jnp.float32, -bound, bound)
    w2 = jax.random.uniform(k2, (input_dim, input_dim), jnp.float32, -bound, bound)
    w3 = jax.random.uniform(k3, (input_dim, input_dim), jnp.float32, -bound, bound)
    w4 = jax.random.uniform(k4, (output_dim, input_dim), jnp.float32, -bound, bound)

    out = logistic_regression_forward(x, w, w1, w2, w3, w4)
    out = jax.block_until_ready(out)

    ref = _reference(x, w, w1, w2, w3, w4)
    assert out.shape == (batch, output_dim), out.shape
    assert jnp.allclose(out, ref, atol=1e-5, rtol=1e-5), float(jnp.max(jnp.abs(out - ref)))

    print("KERNEL_OK")
</pallas_src>

<mosaic_0001>
module attributes {stable_mosaic.version = 11 : i64} {
  func.func @_logreg_kernel(%arg0: memref<8x32xf32, #tpu.memory_space<vmem>>, %arg1: memref<4x32x32xf32, #tpu.memory_space<vmem>>, %arg2: memref<4x32xf32, #tpu.memory_space<vmem>>, %arg3: memref<8x4xf32, #tpu.memory_space<vmem>>) attributes {dimension_semantics = [], scalar_prefetch = 0 : i64, scratch_operands = 0 : i64, tpu.core_type = #tpu.core_type<tc>} {
    %c0 = arith.constant 0 : index
    %c0_0 = arith.constant 0 : index
    %0 = vector.load %arg0[%c0, %c0_0] : memref<8x32xf32, #tpu.memory_space<vmem>>, vector<8x32xf32>
    %c0_1 = arith.constant 0 : index
    %c0_2 = arith.constant 0 : index
    %c0_3 = arith.constant 0 : index
    %1 = vector.load %arg1[%c0_1, %c0_2, %c0_3] : memref<4x32x32xf32, #tpu.memory_space<vmem>>, vector<1x32x32xf32>
    %2 = vector.shape_cast %1 : vector<1x32x32xf32> to vector<32x32xf32>
    %cst = arith.constant dense<0.000000e+00> : vector<8x32xf32>
    %3 = tpu.matmul %0, %2, %cst {dimension_numbers = #tpu.dot_dimension_numbers<[1], [1], [0], [0], [0, 0, 1, 0], [], []>} : vector<8x32xf32>, vector<32x32xf32>, vector<8x32xf32> -> vector<8x32xf32>
    %c1 = arith.constant 1 : index
    %c0_4 = arith.constant 0 : index
    %c0_5 = arith.constant 0 : index
    %4 = vector.load %arg1[%c1, %c0_4, %c0_5] : memref<4x32x32xf32, #tpu.memory_space<vmem>>, vector<1x32x32xf32>
    %5 = vector.shape_cast %4 : vector<1x32x32xf32> to vector<32x32xf32>
    %cst_6 = arith.constant dense<0.000000e+00> : vector<8x32xf32>
    %6 = tpu.matmul %3, %5, %cst_6 {dimension_numbers = #tpu.dot_dimension_numbers<[1], [1], [0], [0], [0, 0, 1, 0], [], []>} : vector<8x32xf32>, vector<32x32xf32>, vector<8x32xf32> -> vector<8x32xf32>
    %c2 = arith.constant 2 : index
    %c0_7 = arith.constant 0 : index
    %c0_8 = arith.constant 0 : index
    %7 = vector.load %arg1[%c2, %c0_7, %c0_8] : memref<4x32x32xf32, #tpu.memory_space<vmem>>, vector<1x32x32xf32>
    %8 = vector.shape_cast %7 : vector<1x32x32xf32> to vector<32x32xf32>
    %cst_9 = arith.constant dense<0.000000e+00> : vector<8x32xf32>
    %9 = tpu.matmul %6, %8, %cst_9 {dimension_numbers = #tpu.dot_dimension_numbers<[1], [1], [0], [0], [0, 0, 1, 0], [], []>} : vector<8x32xf32>, vector<32x32xf32>, vector<8x32xf32> -> vector<8x32xf32>
    %c3 = arith.constant 3 : index
    %c0_10 = arith.constant 0 : index
    %c0_11 = arith.constant 0 : index
    %10 = vector.load %arg1[%c3, %c0_10, %c0_11] : memref<4x32x32xf32, #tpu.memory_space<vmem>>, vector<1x32x32xf32>
    %11 = vector.shape_cast %10 : vector<1x32x32xf32> to vector<32x32xf32>
    %cst_12 = arith.constant dense<0.000000e+00> : vector<8x32xf32>
    %12 = tpu.matmul %9, %11, %cst_12 {dimension_numbers = #tpu.dot_dimension_numbers<[1], [1], [0], [0], [0, 0, 1, 0], [], []>} : vector<8x32xf32>, vector<32x32xf32>, vector<8x32xf32> -> vector<8x32xf32>
    %c0_13 = arith.constant 0 : index
    %c0_14 = arith.constant 0 : index
    %13 = vector.load %arg2[%c0_13, %c0_14] : memref<4x32xf32, #tpu.memory_space<vmem>>, vector<4x32xf32>
    %cst_15 = arith.constant dense<0.000000e+00> : vector<8x4xf32>
    %14 = tpu.matmul %12, %13, %cst_15 {dimension_numbers = #tpu.dot_dimension_numbers<[1], [1], [0], [0], [0, 0, 1, 0], [], []>} : vector<8x32xf32>, vector<4x32xf32>, vector<8x4xf32> -> vector<8x4xf32>
    %cst_16 = arith.constant 0.000000e+00 : f32
    %15 = vector.broadcast %cst_16 : f32 to vector<8x4xf32>
    %16 = arith.subf %15, %14 : vector<8x4xf32>
    %17 = math.exp %16 : vector<8x4xf32>
    %cst_17 = arith.constant 1.000000e+00 : f32
    %18 = vector.broadcast %cst_17 : f32 to vector<8x4xf32>
    %19 = arith.addf %18, %17 : vector<8x4xf32>
    %20 = tpu.reciprocal %19 : vector<8x4xf32> -> vector<8x4xf32>
    %c0_18 = arith.constant 0 : index
    %c0_19 = arith.constant 0 : index
    %21 = vector.load %arg3[%c0_18, %c0_19] : memref<8x4xf32, #tpu.memory_space<vmem>>, vector<8x4xf32>
    tpu.vector_store %arg3[%c0_18, %c0_19], %20 {strides = array<i32>} : memref<8x4xf32, #tpu.memory_space<vmem>>, vector<8x4xf32>,
    return
  }
}

</mosaic_0001>

<llo_original>
// kernel: logistic_regression_forward.1
$region0: #{logistic_regression_forward.1}
  #allocation0 [shape = 'u32[]', space=smem, size = 0x4, offset = 0x4, fixed_abs, tag = 'smem constant byte address 0x4 - core index']
  #allocation1 [shape = 'u32[144,128]{1,0:T(1,128)}', space=vmem, size = 0x12000, scoped, tag = 'internal scratch']
  %s0 = inlined_call_operand.vmem [shape: f32[8,32], index: 0, kind: input, shape index: {}]
  %s1 = inlined_call_operand.vmem [shape: f32[4,32,32], index: 1, kind: input, shape index: {}]
  %s2 = inlined_call_operand.vmem [shape: f32[4,32], index: 2, kind: input, shape index: {}]
  %s3 = inlined_call_operand.vmem [shape: f32[8,4], index: 3, kind: output, shape index: {}]
  %s4 = sld [smem:[#allocation0]]
  $region22: #{logistic_regression_forward.1} parent=0
    _
  %s6 = ssub.s32 1, %s4
  %s7 = scalar_select 0, %s6, %s4
  // Predicated region
  $region2: #{logistic_regression_forward.1} parent=0 // pred_check
    _
  $region3: #{logistic_regression_forward.1} parent=0 // pred_check_branch
    %9 = sbr.rel (0) target = $region5
  $region4: #{logistic_regression_forward.1} parent=0 // pred_region
    _
  $region5: #{logistic_regression_forward.1} parent=0 // pred_fallthru
    _
  // Predicated region
  $region6: #{logistic_regression_forward.1} parent=0 // pred_check
    _
  $region7: #{logistic_regression_forward.1} parent=0 // pred_check_branch
    %11 = sbr.rel (0) target = $region9
  $region8: #{logistic_regression_forward.1} parent=0 // pred_region
    _
  $region9: #{logistic_regression_forward.1} parent=0 // pred_fallthru
    _
  // Predicated region
  $region10: #{logistic_regression_forward.1} parent=0 // pred_check
    _
  $region11: #{logistic_regression_forward.1} parent=0 // pred_check_branch
    %13 = sbr.rel (0) target = $region13
  $region12: #{logistic_regression_forward.1} parent=0 // pred_region
    _
  $region13: #{logistic_regression_forward.1} parent=0 // pred_fallthru
    _
  %v14 = vld [vmem:[%s0] sm:$0xff]
  %v15 = vld [vmem:[%s1] sm:$0xff]
  %v16 = vld [vmem:[%s1 + $0x8] sm:$0xff]
  %v17 = vld [vmem:[%s1 + $0x10] sm:$0xff]
  %v18 = vld [vmem:[%s1 + $0x18] sm:$0xff]
  %vm19 = vcmask 261120
  %v21 = vsel %vm19, %v14, 0
  %v24 = vsel %vm19, %v15, 0
  %v27 = vsel %vm19, %v16, 0
  %v30 = vsel %vm19, %v17, 0
  %v33 = vsel %vm19, %v18, 0
  %35 = vmatprep.subr.mxu0 0.0
  %36 = vmatpush1.xpose.msra.mxu0 %v24
  %37 = vmatprep.subr.mxu0 0.0
  %38 = vmatpush1.xpose.msra.mxu0 %v27
  %39 = vmatprep.subr.mxu0 0.0
  %40 = vmatpush1.xpose.msra.mxu0 %v30
  %41 = vmatprep.subr.mxu0 0.0
  %42 = vmatpush1.xpose.msra.mxu0 %v33
  %43 = vmatprep.subr.mxu0 0.0
  %44 = vmatpush1.xpose.msra.mxu0 0.0
  %45 = vmatprep.subr.mxu0 0.0
  %46 = vmatpush1.xpose.msra.mxu0 0.0
  %47 = vmatprep.subr.mxu0 0.0
  %48 = vmatpush1.xpose.msra.mxu0 0.0
  %49 = vmatprep.subr.mxu0 0.0
  %50 = vmatpush1.xpose.msra.mxu0 0.0
  %51 = vmatprep.subr.mxu0 0.0
  %52 = vmatpush1.xpose.msra.mxu0 0.0
  %53 = vmatprep.subr.mxu0 0.0
  %54 = vmatpush1.xpose.msra.mxu0 0.0
  %55 = vmatprep.subr.mxu0 0.0
  %56 = vmatpush1.xpose.msra.mxu0 0.0
  %57 = vmatprep.subr.mxu0 0.0
  %58 = vmatpush1.xpose.msra.mxu0 0.0
  %59 = vmatprep.subr.mxu0 0.0
  %60 = vmatpush1.xpose.msra.mxu0 0.0
  %61 = vmatprep.subr.mxu0 0.0
  %62 = vmatpush1.xpose.msra.mxu0 0.0
  %63 = vmatprep.subr.mxu0 0.0
  %64 = vmatpush1.xpose.msra.mxu0 0.0
  %65 = vmatprep.subr.mxu0 0.0
  %66 = vmatpush1.xpose.msra.mxu0 0.0
  %67 = vmatprep.subr.mxu0 0.0
  %68 = vmatpush1.xpose.msra.mxu0 0.0
  %69 = vmatprep.subr.mxu0 0.0
  %70 = vmatpush1.xpose.msra.mxu0 0.0
  %71 = vmatprep.subr.mxu0 0.0
  %72 = vmatpush1.xpose.msra.mxu0 0.0
  %73 = vmatprep.subr.mxu0 0.0
  %74 = vmatpush1.xpose.msra.mxu0 0.0
  %75 = vmatprep.subr.mxu0 0.0
  %76 = vmatpush1.xpose.msra.mxu0 0.0
  %77 = vmatprep.subr.mxu0 0.0
  %78 = vmatpush1.xpose.msra.mxu0 0.0
  %79 = vmatprep.subr.mxu0 0.0
  %80 = vmatpush1.xpose.msra.mxu0 0.0
  %81 = vmatprep.subr.mxu0 0.0
  %82 = vmatpush1.xpose.msra.mxu0 0.0
  %83 = vmatprep.subr.mxu0 0.0
  %84 = vmatpush1.xpose.msra.mxu0 0.0
  %85 = vmatprep.subr.mxu0 0.0
  %86 = vmatpush1.xpose.msra.mxu0 0.0
  %87 = vmatprep.subr.mxu0 0.0
  %88 = vmatpush1.xpose.msra.mxu0 0.0
  %89 = vmatprep.subr.mxu0 0.0
  %90 = vmatpush1.xpose.msra.mxu0 0.0
  %91 = vmatprep.subr.mxu0 0.0
  %92 = vmatpush1.xpose.msra.mxu0 0.0
  %93 = vmatprep.subr.mxu0 0.0
  %94 = vmatpush1.xpose.msra.mxu0 0.0
  %95 = vmatprep.subr.mxu0 0.0
  %96 = vmatpush1.xpose.msra.mxu0 0.0
  %97 = vmatprep.subr.mxu0 0.0
  %98 = vmatpush1.xpose.msra.mxu0 0.0
  %99 = vmatprep.mubr.f32.mxu0 0.0
  %100 = vmatmul.mubr.f32.gmra.mrb[0].mxu0 %v21
  %v101 = vpop.f32.mrb[0].mxu0
  %v102 = vadd.f32 0.0, %v101
  %v103 = vpop.f32.mrb[0].mxu0
  %104 = vdwg.mxu0
  %s105 = scalar_lea.vmem %s1, 32
  %v106 = vld [vmem:[%s105] sm:$0xff]
  %v107 = vld [vmem:[%s105 + $0x8] sm:$0xff]
  %v108 = vld [vmem:[%s105 + $0x10] sm:$0xff]
  %v109 = vld [vmem:[%s105 + $0x18] sm:$0xff]
  %v111 = vsel %vm19, %v102, 0
  %v114 = vsel %vm19, %v106, 0
  %v117 = vsel %vm19, %v107, 0
  %v120 = vsel %vm19, %v108, 0
  %v123 = vsel %vm19, %v109, 0
  %125 = vmatprep.subr.mxu0 0.0
  %126 = vmatpush1.xpose.msra.mxu0 %v114
  %127 = vmatprep.subr.mxu0 0.0
  %128 = vmatpush1.xpose.msra.mxu0 %v117
  %129 = vmatprep.subr.mxu0 0.0
  %130 = vmatpush1.xpose.msra.mxu0 %v120
  %131 = vmatprep.subr.mxu0 0.0
  %132 = vmatpush1.xpose.msra.mxu0 %v123
  %133 = vmatprep.subr.mxu0 0.0
  %134 = vmatpush1.xpose.msra.mxu0 0.0
  %135 = vmatprep.subr.mxu0 0.0
  %136 = vmatpush1.xpose.msra.mxu0 0.0
  %137 = vmatprep.subr.mxu0 0.0
  %138 = vmatpush1.xpose.msra.mxu0 0.0
  %139 = vmatprep.subr.mxu0 0.0
  %140 = vmatpush1.xpose.msra.mxu0 0.0
  %141 = vmatprep.subr.mxu0 0.0
  %142 = vmatpush1.xpose.msra.mxu0 0.0
  %143 = vmatprep.subr.mxu0 0.0
  %144 = vmatpush1.xpose.msra.mxu0 0.0
  %145 = vmatprep.subr.mxu0 0.0
  %146 = vmatpush1.xpose.msra.mxu0 0.0
  %147 = vmatprep.subr.mxu0 0.0
  %148 = vmatpush1.xpose.msra.mxu0 0.0
  %149 = vmatprep.subr.mxu0 0.0
  %150 = vmatpush1.xpose.msra.mxu0 0.0
  %151 = vmatprep.subr.mxu0 0.0
  %152 = vmatpush1.xpose.msra.mxu0 0.0
  %153 = vmatprep.subr.mxu0 0.0
  %154 = vmatpush1.xpose.msra.mxu0 0.0
  %155 = vmatprep.subr.mxu0 0.0
  %156 = vmatpush1.xpose.msra.mxu0 0.0
  %157 = vmatprep.subr.mxu0 0.0
  %158 = vmatpush1.xpose.msra.mxu0 0.0
  %159 = vmatprep.subr.mxu0 0.0
  %160 = vmatpush1.xpose.msra.mxu0 0.0
  %161 = vmatprep.subr.mxu0 0.0
  %162 = vmatpush1.xpose.msra.mxu0 0.0
  %163 = vmatprep.subr.mxu0 0.0
  %164 = vmatpush1.xpose.msra.mxu0 0.0
  %165 = vmatprep.subr.mxu0 0.0
  %166 = vmatpush1.xpose.msra.mxu0 0.0
  %167 = vmatprep.subr.mxu0 0.0
  %168 = vmatpush1.xpose.msra.mxu0 0.0
  %169 = vmatprep.subr.mxu0 0.0
  %170 = vmatpush1.xpose.msra.mxu0 0.0
  %171 = vmatprep.subr.mxu0 0.0
  %172 = vmatpush1.xpose.msra.mxu0 0.0
  %173 = vmatprep.subr.mxu0 0.0
  %174 = vmatpush1.xpose.msra.mxu0 0.0
  %175 = vmatprep.subr.mxu0 0.0
  %176 = vmatpush1.xpose.msra.mxu0 0.0
  %177 = vmatprep.subr.mxu0 0.0
  %178 = vmatpush1.xpose.msra.mxu0 0.0
  %179 = vmatprep.subr.mxu0 0.0
  %180 = vmatpush1.xpose.msra.mxu0 0.0
  %181 = vmatprep.subr.mxu0 0.0
  %182 = vmatpush1.xpose.msra.mxu0 0.0
  %183 = vmatprep.subr.mxu0 0.0
  %184 = vmatpush1.xpose.msra.mxu0 0.0
  %185 = vmatprep.subr.mxu0 0.0
  %186 = vmatpush1.xpose.msra.mxu0 0.0
  %187 = vmatprep.subr.mxu0 0.0
  %188 = vmatpush1.xpose.msra.mxu0 0.0
  %189 = vmatprep.mubr.f32.mxu0 0.0
  %190 = vmatmul.mubr.f32.gmra.mrb[0].mxu0 %v111
  %v191 = vpop.f32.mrb[0].mxu0
  %v192 = vadd.f32 0.0, %v191
  %v193 = vpop.f32.mrb[0].mxu0
  %194 = vdwg.mxu0
  %s195 = scalar_lea.vmem %s1, 64
  %v196 = vld [vmem:[%s195] sm:$0xff]
  %v197 = vld [vmem:[%s195 + $0x8] sm:$0xff]
  %v198 = vld [vmem:[%s195 + $0x10] sm:$0xff]
  %v199 = vld [vmem:[%s195 + $0x18] sm:$0xff]
  %v201 = vsel %vm19, %v192, 0
  %v204 = vsel %vm19, %v196, 0
  %v207 = vsel %vm19, %v197, 0
  %v210 = vsel %vm19, %v198, 0
  %v213 = vsel %vm19, %v199, 0
  %215 = vmatprep.subr.mxu0 0.0
  %216 = vmatpush1.xpose.msra.mxu0 %v204
  %217 = vmatprep.subr.mxu0 0.0
  %218 = vmatpush1.xpose.msra.mxu0 %v207
  %219 = vmatprep.subr.mxu0 0.0
  %220 = vmatpush1.xpose.msra.mxu0 %v210
  %221 = vmatprep.subr.mxu0 0.0
  %222 = vmatpush1.xpose.msra.mxu0 %v213
  %223 = vmatprep.subr.mxu0 0.0
  %224 = vmatpush1.xpose.msra.mxu0 0.0
  %225 = vmatprep.subr.mxu0 0.0
  %226 = vmatpush1.xpose.msra.mxu0 0.0
  %227 = vmatprep.subr.mxu0 0.0
  %228 = vmatpush1.xpose.msra.mxu0 0.0
  %229 = vmatprep.subr.mxu0 0.0
  %230 = vmatpush1.xpose.msra.mxu0 0.0
  %231 = vmatprep.subr.mxu0 0.0
  %232 = vmatpush1.xpose.msra.mxu0 0.0
  %233 = vmatprep.subr.mxu0 0.0
  %234 = vmatpush1.xpose.msra.mxu0 0.0
  %235 = vmatprep.subr.mxu0 0.0
  %236 = vmatpush1.xpose.msra.mxu0 0.0
  %237 = vmatprep.subr.mxu0 0.0
  %238 = vmatpush1.xpose.msra.mxu0 0.0
  %239 = vmatprep.subr.mxu0 0.0
  %240 = vmatpush1.xpose.msra.mxu0 0.0
  %241 = vmatprep.subr.mxu0 0.0
  %242 = vmatpush1.xpose.msra.mxu0 0.0
  %243 = vmatprep.subr.mxu0 0.0
  %244 = vmatpush1.xpose.msra.mxu0 0.0
  %245 = vmatprep.subr.mxu0 0.0
  %246 = vmatpush1.xpose.msra.mxu0 0.0
  %247 = vmatprep.subr.mxu0 0.0
  %248 = vmatpush1.xpose.msra.mxu0 0.0
  %249 = vmatprep.subr.mxu0 0.0
  %250 = vmatpush1.xpose.msra.mxu0 0.0
  %251 = vmatprep.subr.mxu0 0.0
  %252 = vmatpush1.xpose.msra.mxu0 0.0
  %253 = vmatprep.subr.mxu0 0.0
  %254 = vmatpush1.xpose.msra.mxu0 0.0
  %255 = vmatprep.subr.mxu0 0.0
  %256 = vmatpush1.xpose.msra.mxu0 0.0
  %257 = vmatprep.subr.mxu0 0.0
  %258 = vmatpush1.xpose.msra.mxu0 0.0
  %259 = vmatprep.subr.mxu0 0.0
  %260 = vmatpush1.xpose.msra.mxu0 0.0
  %261 = vmatprep.subr.mxu0 0.0
  %262 = vmatpush1.xpose.msra.mxu0 0.0
  %263 = vmatprep.subr.mxu0 0.0
  %264 = vmatpush1.xpose.msra.mxu0 0.0
  %265 = vmatprep.subr.mxu0 0.0
  %266 = vmatpush1.xpose.msra.mxu0 0.0
  %267 = vmatprep.subr.mxu0 0.0
  %268 = vmatpush1.xpose.msra.mxu0 0.0
  %269 = vmatprep.subr.mxu0 0.0
  %270 = vmatpush1.xpose.msra.mxu0 0.0
  %271 = vmatprep.subr.mxu0 0.0
  %272 = vmatpush1.xpose.msra.mxu0 0.0
  %273 = vmatprep.subr.mxu0 0.0
  %274 = vmatpush1.xpose.msra.mxu0 0.0
  %275 = vmatprep.subr.mxu0 0.0
  %276 = vmatpush1.xpose.msra.mxu0 0.0
  %277 = vmatprep.subr.mxu0 0.0
  %278 = vmatpush1.xpose.msra.mxu0 0.0
  %279 = vmatprep.mubr.f32.mxu0 0.0
  %280 = vmatmul.mubr.f32.gmra.mrb[0].mxu0 %v201
  %v281 = vpop.f32.mrb[0].mxu0
  %v282 = vadd.f32 0.0, %v281
  %v283 = vpop.f32.mrb[0].mxu0
  %284 = vdwg.mxu0
  %s285 = scalar_lea.vmem %s1, 96
  %v286 = vld [vmem:[%s285] sm:$0xff]
  %v287 = vld [vmem:[%s285 + $0x8] sm:$0xff]
  %v288 = vld [vmem:[%s285 + $0x10] sm:$0xff]
  %v289 = vld [vmem:[%s285 + $0x18] sm:$0xff]
  %v291 = vsel %vm19, %v282, 0
  %v294 = vsel %vm19, %v286, 0
  %v297 = vsel %vm19, %v287, 0
  %v300 = vsel %vm19, %v288, 0
  %v303 = vsel %vm19, %v289, 0
  %305 = vmatprep.subr.mxu0 0.0
  %306 = vmatpush1.xpose.msra.mxu0 %v294
  %307 = vmatprep.subr.mxu0 0.0
  %308 = vmatpush1.xpose.msra.mxu0 %v297
  %309 = vmatprep.subr.mxu0 0.0
  %310 = vmatpush1.xpose.msra.mxu0 %v300
  %311 = vmatprep.subr.mxu0 0.0
  %312 = vmatpush1.xpose.msra.mxu0 %v303
  %313 = vmatprep.subr.mxu0 0.0
  %314 = vmatpush1.xpose.msra.mxu0 0.0
  %315 = vmatprep.subr.mxu0 0.0
  %316 = vmatpush1.xpose.msra.mxu0 0.0
  %317 = vmatprep.subr.mxu0 0.0
  %318 = vmatpush1.xpose.msra.mxu0 0.0
  %319 = vmatprep.subr.mxu0 0.0
  %320 = vmatpush1.xpose.msra.mxu0 0.0
  %321 = vmatprep.subr.mxu0 0.0
  %322 = vmatpush1.xpose.msra.mxu0 0.0
  %323 = vmatprep.subr.mxu0 0.0
  %324 = vmatpush1.xpose.msra.mxu0 0.0
  %325 = vmatprep.subr.mxu0 0.0
  %326 = vmatpush1.xpose.msra.mxu0 0.0
  %327 = vmatprep.subr.mxu0 0.0
  %328 = vmatpush1.xpose.msra.mxu0 0.0
  %329 = vmatprep.subr.mxu0 0.0
  %330 = vmatpush1.xpose.msra.mxu0 0.0
  %331 = vmatprep.subr.mxu0 0.0
  %332 = vmatpush1.xpose.msra.mxu0 0.0
  %333 = vmatprep.subr.mxu0 0.0
  %334 = vmatpush1.xpose.msra.mxu0 0.0
  %335 = vmatprep.subr.mxu0 0.0
  %336 = vmatpush1.xpose.msra.mxu0 0.0
  %337 = vmatprep.subr.mxu0 0.0
  %338 = vmatpush1.xpose.msra.mxu0 0.0
  %339 = vmatprep.subr.mxu0 0.0
  %340 = vmatpush1.xpose.msra.mxu0 0.0
  %341 = vmatprep.subr.mxu0 0.0
  %342 = vmatpush1.xpose.msra.mxu0 0.0
  %343 = vmatprep.subr.mxu0 0.0
  %344 = vmatpush1.xpose.msra.mxu0 0.0
  %345 = vmatprep.subr.mxu0 0.0
  %346 = vmatpush1.xpose.msra.mxu0 0.0
  %347 = vmatprep.subr.mxu0 0.0
  %348 = vmatpush1.xpose.msra.mxu0 0.0
  %349 = vmatprep.subr.mxu0 0.0
  %350 = vmatpush1.xpose.msra.mxu0 0.0
  %351 = vmatprep.subr.mxu0 0.0
  %352 = vmatpush1.xpose.msra.mxu0 0.0
  %353 = vmatprep.subr.mxu0 0.0
  %354 = vmatpush1.xpose.msra.mxu0 0.0
  %355 = vmatprep.subr.mxu0 0.0
  %356 = vmatpush1.xpose.msra.mxu0 0.0
  %357 = vmatprep.subr.mxu0 0.0
  %358 = vmatpush1.xpose.msra.mxu0 0.0
  %359 = vmatprep.subr.mxu0 0.0
  %360 = vmatpush1.xpose.msra.mxu0 0.0
  %361 = vmatprep.subr.mxu0 0.0
  %362 = vmatpush1.xpose.msra.mxu0 0.0
  %363 = vmatprep.subr.mxu0 0.0
  %364 = vmatpush1.xpose.msra.mxu0 0.0
  %365 = vmatprep.subr.mxu0 0.0
  %366 = vmatpush1.xpose.msra.mxu0 0.0
  %367 = vmatprep.subr.mxu0 0.0
  %368 = vmatpush1.xpose.msra.mxu0 0.0
  %369 = vmatprep.mubr.f32.mxu0 0.0
  %370 = vmatmul.mubr.f32.gmra.mrb[0].mxu0 %v291
  %v371 = vpop.f32.mrb[0].mxu0
  %v372 = vadd.f32 0.0, %v371
  %v373 = vpop.f32.mrb[0].mxu0
  %374 = vdwg.mxu0
  %v375 = vld [vmem:[%s2] sm:$0xf]
  %v377 = vsel %vm19, %v372, 0
  %v380 = vsel %vm19, %v375, 0
  %382 = vmatprep.subr.mxu0 0.0
  %383 = vmatpush1.xpose.msra.mxu0 %v380
  %384 = vmatprep.subr.mxu0 0.0
  %385 = vmatpush1.xpose.msra.mxu0 0.0
  %386 = vmatprep.subr.mxu0 0.0
  %387 = vmatpush1.xpose.msra.mxu0 0.0
  %388 = vmatprep.subr.mxu0 0.0
  %389 = vmatpush1.xpose.msra.mxu0 0.0
  %390 = vmatprep.subr.mxu0 0.0
  %391 = vmatpush1.xpose.msra.mxu0 0.0
  %392 = vmatprep.subr.mxu0 0.0
  %393 = vmatpush1.xpose.msra.mxu0 0.0
  %394 = vmatprep.subr.mxu0 0.0
  %395 = vmatpush1.xpose.msra.mxu0 0.0
  %396 = vmatprep.subr.mxu0 0.0
  %397 = vmatpush1.xpose.msra.mxu0 0.0
  %398 = vmatprep.subr.mxu0 0.0
  %399 = vmatpush1.xpose.msra.mxu0 0.0
  %400 = vmatprep.subr.mxu0 0.0
  %401 = vmatpush1.xpose.msra.mxu0 0.0
  %402 = vmatprep.subr.mxu0 0.0
  %403 = vmatpush1.xpose.msra.mxu0 0.0
  %404 = vmatprep.subr.mxu0 0.0
  %405 = vmatpush1.xpose.msra.mxu0 0.0
  %406 = vmatprep.subr.mxu0 0.0
  %407 = vmatpush1.xpose.msra.mxu0 0.0
  %408 = vmatprep.subr.mxu0 0.0
  %409 = vmatpush1.xpose.msra.mxu0 0.0
  %410 = vmatprep.subr.mxu0 0.0
  %411 = vmatpush1.xpose.msra.mxu0 0.0
  %412 = vmatprep.subr.mxu0 0.0
  %413 = vmatpush1.xpose.msra.mxu0 0.0
  %414 = vmatprep.subr.mxu0 0.0
  %415 = vmatpush1.xpose.msra.mxu0 0.0
  %416 = vmatprep.subr.mxu0 0.0
  %417 = vmatpush1.xpose.msra.mxu0 0.0
  %418 = vmatprep.subr.mxu0 0.0
  %419 = vmatpush1.xpose.msra.mxu0 0.0
  %420 = vmatprep.subr.mxu0 0.0
  %421 = vmatpush1.xpose.msra.mxu0 0.0
  %422 = vmatprep.subr.mxu0 0.0
  %423 = vmatpush1.xpose.msra.mxu0 0.0
  %424 = vmatprep.subr.mxu0 0.0
  %425 = vmatpush1.xpose.msra.mxu0 0.0
  %426 = vmatprep.subr.mxu0 0.0
  %427 = vmatpush1.xpose.msra.mxu0 0.0
  %428 = vmatprep.subr.mxu0 0.0
  %429 = vmatpush1.xpose.msra.mxu0 0.0
  %430 = vmatprep.subr.mxu0 0.0
  %431 = vmatpush1.xpose.msra.mxu0 0.0
  %432 = vmatprep.subr.mxu0 0.0
  %433 = vmatpush1.xpose.msra.mxu0 0.0
  %434 = vmatprep.subr.mxu0 0.0
  %435 = vmatpush1.xpose.msra.mxu0 0.0
  %436 = vmatprep.subr.mxu0 0.0
  %437 = vmatpush1.xpose.msra.mxu0 0.0
  %438 = vmatprep.subr.mxu0 0.0
  %439 = vmatpush1.xpose.msra.mxu0 0.0
  %440 = vmatprep.subr.mxu0 0.0
  %441 = vmatpush1.xpose.msra.mxu0 0.0
  %442 = vmatprep.subr.mxu0 0.0
  %443 = vmatpush1.xpose.msra.mxu0 0.0
  %444 = vmatprep.subr.mxu0 0.0
  %445 = vmatpush1.xpose.msra.mxu0 0.0
  %446 = vmatprep.mubr.f32.mxu0 0.0
  %447 = vmatmul.mubr.f32.gmra.mrb[0].mxu0 %v377
  %v448 = vpop.f32.mrb[0].mxu0
  %v449 = vadd.f32 0.0, %v448
  %v450 = vpop.f32.mrb[0].mxu0
  %451 = vdwg.mxu0
  %v452 = vsub.f32 0.0, %v449
  %v453 = vmul.f32 %v452, 1.442695
  %v454 = vpow.pop %v453
  %v455 = vadd.f32 %v454, 1.0
  %v456 = vrcp.pop %v455
  %vm457 = vcmask 31744
  %458 = vst.msk [vmem:[%s3] sm:$0xff] %vm457, %v456
  // Predicated region
  $region14: #{logistic_regression_forward.1} parent=0 // pred_check
    _
  $region15: #{logistic_regression_forward.1} parent=0 // pred_check_branch
    %460 = sbr.rel (0) target = $region17
  $region16: #{logistic_regression_forward.1} parent=0 // pred_region
    _
  $region17: #{logistic_regression_forward.1} parent=0 // pred_fallthru
    _
  // Predicated region
  $region18: #{logistic_regression_forward.1} parent=0 // pred_check
    _
  $region19: #{logistic_regression_forward.1} parent=0 // pred_check_branch
    %462 = sbr.rel (0) target = $region21
  $region20: #{logistic_regression_forward.1} parent=0 // pred_region
    _
  $region21: #{logistic_regression_forward.1} parent=0 // pred_fallthru
    _

</llo_original>
